<compile_context>
chip_gen: v7x
topology: tpu7x:2x2x1
jax: 0.10.0
libtpu: 0.0.40
codegen_flags: <defaults>
</compile_context>

<pallas_src>
import jax
import jax.numpy as jnp
from jax.experimental import pallas as pl
from jax.experimental.pallas import tpu as pltpu

BATCH = 4
SEQ_LEN = 16          # stands in for WINDOW_SIZE=100 at small scale
IN_CH = 1
C1 = 16
C2 = 32
OUT = 1
LANES = 128           # lane-dense output width

# MXU operand dtype.  On v6e/v7x set to jnp.bfloat16 (native MXU rate, half
# the operand DMA/vreg footprint; accumulation stays f32 via
# preferred_element_type) and relax the allclose tolerance to ~1e-2.  Kept
# f32 here so (a) the small-shape check stays within 1e-4 of the f32
# reference and (b) v5e (no native bf16 VPU/EUP) pays no packing cost.
MM_DTYPE = jnp.float32


def cnn_kernel(x_ref, w1_ref, b1_ref, w2_ref, b2_ref, wfc_ref, bfc_ref,
               o_ref, h1p_ref):
    # x_ref: (TB, L, 3*Cin) -- conv1 im2col built in the wrapper.
    tb, L, kcin = x_ref.shape
    c1 = w1_ref.shape[1]
    c2 = w2_ref.shape[1]

    # ---- conv1: one MXU matmul over the whole batch tile (M = TB*L) ------
    a1 = x_ref[...].reshape(tb * L, kcin).astype(MM_DTYPE)
    h1 = jnp.dot(a1, w1_ref[...], preferred_element_type=jnp.float32)
    h1 = jnp.maximum(h1 + b1_ref[...], 0.0)                   # (TB*L, C1)

    # ---- conv2: zero-bordered VMEM scratch -> im2col -> one matmul -------
    # Borders re-zeroed every step (see header note re: megacore safety).
    h1p_ref[:, 0:1, :] = jnp.zeros((tb, 1, c1), jnp.float32)
    h1p_ref[:, L + 1:L + 2, :] = jnp.zeros((tb, 1, c1), jnp.float32)
    h1p_ref[:, 1:L + 1, :] = h1.reshape(tb, L, c1)
    h1p = h1p_ref[...]                                        # (TB, L+2, C1)
    a2 = jnp.concatenate(
        [h1p[:, 0:L, :], h1p[:, 1:L + 1, :], h1p[:, 2:L + 2, :]],
        axis=-1)                                              # (TB, L, 3*C1)
    h2 = jnp.dot(a2.reshape(tb * L, 3 * c1).astype(MM_DTYPE), w2_ref[...],
                 preferred_element_type=jnp.float32)
    h2 = jnp.maximum(h2 + b2_ref[...], 0.0)                   # (TB*L, C2)

    # ---- fc: 2-D position-major weight, elementwise mul + reduction ------
    # (no (L,C2)->(1,L*C2) relayout, no degenerate N=1 MXU matmul)
    prod = h2.reshape(tb, L, c2) * wfc_ref[...][None, :, :]   # (TB, L, C2)
    s = jnp.sum(prod, axis=-1)                                # (TB, L)   lane-reduce
    val = jnp.sum(s, axis=-1, keepdims=True) + bfc_ref[0, 0]  # (TB, 1)
    # Lane-dense store; the wrapper slices column 0.
    o_ref[...] = jnp.broadcast_to(val.reshape(tb, 1, 1), o_ref.shape)


def _pick_batch_tile(batch, seq_len, target_rows=256):
    """Batch tile so M = TB*L approaches the MXU height (128 on v5e,
    256 on v6e/v7x), while keeping >= 2 grid steps (both v7x TensorCores
    busy) and TB | batch."""
    tb = max(1, min(batch, target_rows // max(seq_len, 1)))
    while tb > 1 and pl.cdiv(batch, tb) < 2:
        tb -= 1
    while batch % tb != 0:
        tb -= 1
    return tb


def cnn_forward(x, params):
    """x: (B, L, C_in) float32, params: dict of PyTorch-layout weights."""
    B, L, Cin = x.shape
    w1, b1, w2, b2, wfc, bfc = (params["w1"], params["b1"], params["w2"],
                                params["b2"], params["wfc"], params["bfc"])
    c1 = w1.shape[0]
    c2 = w2.shape[0]

    # --- layout glue (plain JAX, folded into the input DMAs) --------------
    w1_r = jnp.transpose(w1, (2, 1, 0)).reshape(3 * Cin, c1).astype(MM_DTYPE)
    w2_r = jnp.transpose(w2, (2, 1, 0)).reshape(3 * c1, c2).astype(MM_DTYPE)
    b1_r = b1.reshape(1, c1).astype(jnp.float32)
    b2_r = b2.reshape(1, c2).astype(jnp.float32)
    # fc weight (OUT, C2*L) with channel-major flatten [c*L + l]
    #   -> position-major 2-D (L, C2): wfc2d[l, c] = wfc[0, c*L + l]
    wfc_r = jnp.transpose(wfc.reshape(OUT, c2, L)[0], (1, 0)).astype(jnp.float32)
    bfc_r = bfc.reshape(1, OUT).astype(jnp.float32)           # SMEM scalar

    # conv1 im2col built in the wrapper: (B, L, 3*Cin)
    xp = jnp.pad(x.astype(jnp.float32), ((0, 0), (1, 1), (0, 0)))
    x_i2c = jnp.concatenate(
        [xp[:, 0:L, :], xp[:, 1:L + 1, :], xp[:, 2:L + 2, :]], axis=-1)

    TB = _pick_batch_tile(B, L)
    grid = (B // TB,)

    grid_spec = pltpu.PrefetchScalarGridSpec(
        num_scalar_prefetch=0,
        grid=grid,
        in_specs=[
            pl.BlockSpec((TB, L, 3 * Cin), lambda b: (b, 0, 0)),
            pl.BlockSpec((3 * Cin, c1), lambda b: (0, 0)),
            pl.BlockSpec((1, c1), lambda b: (0, 0)),
            pl.BlockSpec((3 * c1, c2), lambda b: (0, 0)),
            pl.BlockSpec((1, c2), lambda b: (0, 0)),
            pl.BlockSpec((L, c2), lambda b: (0, 0)),
            pl.BlockSpec(memory_space=pltpu.MemorySpace.SMEM),  # fc bias scalar
        ],
        out_specs=pl.BlockSpec((TB, 1, LANES), lambda b: (b, 0, 0)),
        scratch_shapes=[pltpu.VMEM((TB, L + 2, c1), jnp.float32)],
    )

    out_padded = pl.pallas_call(
        cnn_kernel,
        out_shape=jax.ShapeDtypeStruct((B, 1, LANES), jnp.float32),
        grid_spec=grid_spec,
        compiler_params=pltpu.CompilerParams(
            dimension_semantics=("parallel",)),
    )(x_i2c, w1_r, b1_r, w2_r, b2_r, wfc_r, bfc_r)

    return out_padded[:, 0, :OUT]                              # (B, OUT)


def torch_reference(x, params):
    """Pure-JAX re-implementation of the PyTorch forward (NCL layout)."""
    w1, b1, w2, b2, wfc, bfc = (params["w1"], params["b1"], params["w2"],
                                params["b2"], params["wfc"], params["bfc"])
    xt = jnp.transpose(x, (0, 2, 1))                           # (B, Cin, L)

    def conv1d(inp, w, b):
        B, Ci, L = inp.shape
        pad = jnp.pad(inp, ((0, 0), (0, 0), (1, 1)))
        out = jnp.zeros((B, w.shape[0], L), jnp.float32)
        for k in range(3):
            out = out + jnp.einsum("oc,bcl->bol", w[:, :, k], pad[:, :, k:k + L])
        return out + b[None, :, None]

    h1 = jnp.maximum(conv1d(xt, w1, b1), 0.0)
    h2 = jnp.maximum(conv1d(h1, w2, b2), 0.0)
    flat = h2.reshape(h2.shape[0], -1)                         # channel-major
    return flat @ wfc.T + bfc[None, :]


def init_params(key):
    ks = jax.random.split(key, 6)
    return {
        "w1": 0.1 * jax.random.normal(ks[0], (C1, IN_CH, 3), jnp.float32),
        "b1": 0.1 * jax.random.normal(ks[1], (C1,), jnp.float32),
        "w2": 0.1 * jax.random.normal(ks[2], (C2, C1, 3), jnp.float32),
        "b2": 0.1 * jax.random.normal(ks[3], (C2,), jnp.float32),
        "wfc": 0.1 * jax.random.normal(ks[4], (OUT, SEQ_LEN * C2), jnp.float32),
        "bfc": 0.1 * jax.random.normal(ks[5], (OUT,), jnp.float32),
    }


if __name__ == "__main__":
    key = jax.random.PRNGKey(0)
    kx, kp = jax.random.split(key)
    x = jax.random.normal(kx, (BATCH, SEQ_LEN, IN_CH), jnp.float32)
    params = init_params(kp)

    out = cnn_forward(x, params)
    out = jax.block_until_ready(out)

    ref = torch_reference(x, params)
    assert out.shape == (BATCH, OUT)
    assert jnp.allclose(out, ref, atol=1e-4, rtol=1e-4), (out, ref)
    print("KERNEL_OK")
</pallas_src>

<mosaic_0001>
module attributes {stable_mosaic.version = 11 : i64} {
  func.func @cnn_kernel(%arg0: i32, %arg1: memref<2x16x3xf32, #tpu.memory_space<vmem>>, %arg2: memref<3x16xf32, #tpu.memory_space<vmem>>, %arg3: memref<1x16xf32, #tpu.memory_space<vmem>>, %arg4: memref<48x32xf32, #tpu.memory_space<vmem>>, %arg5: memref<1x32xf32, #tpu.memory_space<vmem>>, %arg6: memref<16x32xf32, #tpu.memory_space<vmem>>, %arg7: memref<1x1xf32, #tpu.memory_space<smem>>, %arg8: memref<2x1x128xf32, #tpu.memory_space<vmem>>, %arg9: memref<2x18x16xf32, #tpu.memory_space<vmem>>) attributes {dimension_semantics = [#tpu.dimension_semantics<parallel>], iteration_bounds = array<i64: 2>, scalar_prefetch = 0 : i64, scratch_operands = 1 : i64, tpu.core_type = #tpu.core_type<tc>, window_params = [{transform_indices = @transform_0, window_bounds = array<i64: 2, 16, 3>}, {pipeline_mode = #tpu.pipeline_mode<synchronous>, transform_indices = @transform_1, window_bounds = array<i64: 3, 16>}, {pipeline_mode = #tpu.pipeline_mode<synchronous>, transform_indices = @transform_2, window_bounds = array<i64: 1, 16>}, {pipeline_mode = #tpu.pipeline_mode<synchronous>, transform_indices = @transform_3, window_bounds = array<i64: 48, 32>}, {pipeline_mode = #tpu.pipeline_mode<synchronous>, transform_indices = @transform_4, window_bounds = array<i64: 1, 32>}, {pipeline_mode = #tpu.pipeline_mode<synchronous>, transform_indices = @transform_5, window_bounds = array<i64: 16, 32>}, {transform_indices = @transform_6, window_bounds = array<i64: 1, 1>}, {transform_indices = @transform_7, window_bounds = array<i64: 2, 1, 128>}]} {
    %c0 = arith.constant 0 : index
    %c0_0 = arith.constant 0 : index
    %c0_1 = arith.constant 0 : index
    %0 = vector.load %arg1[%c0, %c0_0, %c0_1] : memref<2x16x3xf32, #tpu.memory_space<vmem>>, vector<2x16x3xf32>
    %1 = vector.shape_cast %0 : vector<2x16x3xf32> to vector<32x3xf32>
    %c0_2 = arith.constant 0 : index
    %c0_3 = arith.constant 0 : index
    %2 = vector.load %arg2[%c0_2, %c0_3] : memref<3x16xf32, #tpu.memory_space<vmem>>, vector<3x16xf32>
    %cst = arith.constant dense<0.000000e+00> : vector<32x16xf32>
    %3 = tpu.matmul %1, %2, %cst {dimension_numbers = #tpu.dot_dimension_numbers<[1], [0], [0], [1], [0, 0, 1, 1], [], []>} : vector<32x3xf32>, vector<3x16xf32>, vector<32x16xf32> -> vector<32x16xf32>
    %c0_4 = arith.constant 0 : index
    %c0_5 = arith.constant 0 : index
    %4 = vector.load %arg3[%c0_4, %c0_5] : memref<1x16xf32, #tpu.memory_space<vmem>>, vector<1x16xf32>
    %5 = vector.broadcast %4 : vector<1x16xf32> to vector<32x16xf32>
    %6 = arith.addf %3, %5 : vector<32x16xf32>
    %cst_6 = arith.constant 0.000000e+00 : f32
    %7 = vector.broadcast %cst_6 : f32 to vector<32x16xf32>
    %8 = arith.maximumf %6, %7 : vector<32x16xf32>
    %cst_7 = arith.constant 0.000000e+00 : f32
    %9 = vector.broadcast %cst_7 : f32 to vector<2x1x16xf32>
    %c0_8 = arith.constant 0 : index
    %c0_9 = arith.constant 0 : index
    %c0_10 = arith.constant 0 : index
    %10 = vector.load %arg9[%c0_8, %c0_9, %c0_10] : memref<2x18x16xf32, #tpu.memory_space<vmem>>, vector<2x1x16xf32>
    tpu.vector_store %arg9[%c0_8, %c0_9, %c0_10], %9 {strides = array<i32>} : memref<2x18x16xf32, #tpu.memory_space<vmem>>, vector<2x1x16xf32>,
    %cst_11 = arith.constant 0.000000e+00 : f32
    %11 = vector.broadcast %cst_11 : f32 to vector<2x1x16xf32>
    %c0_12 = arith.constant 0 : index
    %c17 = arith.constant 17 : index
    %c0_13 = arith.constant 0 : index
    %12 = vector.load %arg9[%c0_12, %c17, %c0_13] : memref<2x18x16xf32, #tpu.memory_space<vmem>>, vector<2x1x16xf32>
    tpu.vector_store %arg9[%c0_12, %c17, %c0_13], %11 {strides = array<i32>} : memref<2x18x16xf32, #tpu.memory_space<vmem>>, vector<2x1x16xf32>,
    %13 = vector.shape_cast %8 : vector<32x16xf32> to vector<2x16x16xf32>
    %c0_14 = arith.constant 0 : index
    %c1 = arith.constant 1 : index
    %c0_15 = arith.constant 0 : index
    %14 = vector.load %arg9[%c0_14, %c1, %c0_15] : memref<2x18x16xf32, #tpu.memory_space<vmem>>, vector<2x16x16xf32>
    tpu.vector_store %arg9[%c0_14, %c1, %c0_15], %13 {strides = array<i32>} : memref<2x18x16xf32, #tpu.memory_space<vmem>>, vector<2x16x16xf32>,
    %c0_16 = arith.constant 0 : index
    %c0_17 = arith.constant 0 : index
    %c0_18 = arith.constant 0 : index
    %15 = vector.load %arg9[%c0_16, %c0_17, %c0_18] : memref<2x18x16xf32, #tpu.memory_space<vmem>>, vector<2x18x16xf32>
    %16 = vector.extract_strided_slice %15 {offsets = [0, 0, 0], sizes = [2, 16, 16], strides = [1, 1, 1]} : vector<2x18x16xf32> to vector<2x16x16xf32>
    %17 = vector.extract_strided_slice %15 {offsets = [0, 1, 0], sizes = [2, 16, 16], strides = [1, 1, 1]} : vector<2x18x16xf32> to vector<2x16x16xf32>
    %18 = vector.extract_strided_slice %15 {offsets = [0, 2, 0], sizes = [2, 16, 16], strides = [1, 1, 1]} : vector<2x18x16xf32> to vector<2x16x16xf32>
    %19 = tpu.concatenate %16, %17, %18 in 2 : vector<2x16x16xf32>, vector<2x16x16xf32>, vector<2x16x16xf32> -> vector<2x16x48xf32>
    %20 = vector.shape_cast %19 : vector<2x16x48xf32> to vector<32x48xf32>
    %c0_19 = arith.constant 0 : index
    %c0_20 = arith.constant 0 : index
    %21 = vector.load %arg4[%c0_19, %c0_20] : memref<48x32xf32, #tpu.memory_space<vmem>>, vector<48x32xf32>
    %cst_21 = arith.constant dense<0.000000e+00> : vector<32x32xf32>
    %22 = tpu.matmul %20, %21, %cst_21 {dimension_numbers = #tpu.dot_dimension_numbers<[1], [0], [0], [1], [0, 0, 1, 1], [], []>} : vector<32x48xf32>, vector<48x32xf32>, vector<32x32xf32> -> vector<32x32xf32>
    %c0_22 = arith.constant 0 : index
    %c0_23 = arith.constant 0 : index
    %23 = vector.load %arg5[%c0_22, %c0_23] : memref<1x32xf32, #tpu.memory_space<vmem>>, vector<1x32xf32>
    %24 = vector.broadcast %23 : vector<1x32xf32> to vector<32x32xf32>
    %25 = arith.addf %22, %24 : vector<32x32xf32>
    %cst_24 = arith.constant 0.000000e+00 : f32
    %26 = vector.broadcast %cst_24 : f32 to vector<32x32xf32>
    %27 = arith.maximumf %25, %26 : vector<32x32xf32>
    %28 = vector.shape_cast %27 : vector<32x32xf32> to vector<2x16x32xf32>
    %c0_25 = arith.constant 0 : index
    %c0_26 = arith.constant 0 : index
    %29 = vector.load %arg6[%c0_25, %c0_26] : memref<16x32xf32, #tpu.memory_space<vmem>>, vector<16x32xf32>
    %30 = vector.shape_cast %29 : vector<16x32xf32> to vector<1x16x32xf32>
    %31 = vector.broadcast %30 : vector<1x16x32xf32> to vector<2x16x32xf32>
    %32 = arith.mulf %28, %31 : vector<2x16x32xf32>
    %cst_27 = arith.constant dense<0.000000e+00> : vector<2x16xf32>
    %33 = vector.multi_reduction <add>, %32, %cst_27 [2] : vector<2x16x32xf32> to vector<2x16xf32>
    %cst_28 = arith.constant dense<0.000000e+00> : vector<2xf32>
    %34 = vector.multi_reduction <add>, %33, %cst_28 [1] : vector<2x16xf32> to vector<2xf32>
    %35 = vector.shape_cast %34 : vector<2xf32> to vector<2x1xf32>
    %c0_29 = arith.constant 0 : index
    %c0_30 = arith.constant 0 : index
    %36 = memref.load %arg7[%c0_29, %c0_30] : memref<1x1xf32, #tpu.memory_space<smem>>
    %37 = vector.broadcast %36 : f32 to vector<2x1xf32>
    %38 = arith.addf %35, %37 : vector<2x1xf32>
    %39 = vector.shape_cast %38 : vector<2x1xf32> to vector<2x1x1xf32>
    %40 = vector.shape_cast %39 : vector<2x1x1xf32> to vector<2x1x1xf32>
    %41 = vector.broadcast %40 : vector<2x1x1xf32> to vector<2x1x128xf32>
    %c0_31 = arith.constant 0 : index
    %c0_32 = arith.constant 0 : index
    %c0_33 = arith.constant 0 : index
    %42 = vector.load %arg8[%c0_31, %c0_32, %c0_33] : memref<2x1x128xf32, #tpu.memory_space<vmem>>, vector<2x1x128xf32>
    tpu.vector_store %arg8[%c0_31, %c0_32, %c0_33], %41 {strides = array<i32>} : memref<2x1x128xf32, #tpu.memory_space<vmem>>, vector<2x1x128xf32>,
    return
  }
  func.func @transform_0(%arg0: i32) -> (i32, i32, i32) {
    %c0_i32 = arith.constant 0 : i32
    %c0_i32_0 = arith.constant 0 : i32
    %c0_i32_1 = arith.constant 0 : i32
    return %arg0, %c0_i32, %c0_i32_0 : i32, i32, i32
  }
  func.func @transform_1(%arg0: i32) -> (i32, i32) {
    %c0_i32 = arith.constant 0 : i32
    %c0_i32_0 = arith.constant 0 : i32
    %c0_i32_1 = arith.constant 0 : i32
    return %c0_i32, %c0_i32_0 : i32, i32
  }
  func.func @transform_2(%arg0: i32) -> (i32, i32) {
    %c0_i32 = arith.constant 0 : i32
    %c0_i32_0 = arith.constant 0 : i32
    %c0_i32_1 = arith.constant 0 : i32
    return %c0_i32, %c0_i32_0 : i32, i32
  }
  func.func @transform_3(%arg0: i32) -> (i32, i32) {
    %c0_i32 = arith.constant 0 : i32
    %c0_i32_0 = arith.constant 0 : i32
    %c0_i32_1 = arith.constant 0 : i32
    return %c0_i32, %c0_i32_0 : i32, i32
  }
  func.func @transform_4(%arg0: i32) -> (i32, i32) {
    %c0_i32 = arith.constant 0 : i32
    %c0_i32_0 = arith.constant 0 : i32
    %c0_i32_1 = arith.constant 0 : i32
    return %c0_i32, %c0_i32_0 : i32, i32
  }
  func.func @transform_5(%arg0: i32) -> (i32, i32) {
    %c0_i32 = arith.constant 0 : i32
    %c0_i32_0 = arith.constant 0 : i32
    %c0_i32_1 = arith.constant 0 : i32
    return %c0_i32, %c0_i32_0 : i32, i32
  }
  func.func @transform_6(%arg0: i32) -> (i32, i32) {
    %c0_i32 = arith.constant 0 : i32
    %c0_i32_0 = arith.constant 0 : i32
    %c0_i32_1 = arith.constant 0 : i32
    return %c0_i32, %c0_i32_0 : i32, i32
  }
  func.func @transform_7(%arg0: i32) -> (i32, i32, i32) {
    %c0_i32 = arith.constant 0 : i32
    %c0_i32_0 = arith.constant 0 : i32
    %c0_i32_1 = arith.constant 0 : i32
    return %arg0, %c0_i32, %c0_i32_0 : i32, i32, i32
  }
}

</mosaic_0001>

<llo_original>
// kernel: tpu_custom_call.1
$region0: #{tpu_custom_call.1}
  #allocation0 [shape = 'u32[]', space=smem, size = 0x4, offset = 0x4, fixed_abs, tag = 'smem constant byte address 0x4 - core index']
  #allocation1 [shape = 'u32[144,128]{1,0:T(1,128)}', space=vmem, size = 0x12000, scoped, tag = 'internal scratch']
  #allocation2 [shape = 'f32[2,18,16]{2,1,0:T(8,128)}', space=vmem, size = 0x6000, scoped, tag = 'scratch operand']
  #allocation3 [shape = 'f32[1,1]{1,0:T(1,128)S(6)}', space=smem, size = 0x200, scoped, tag = 'scoped memory for tpu_custom_call.1']
  %s0 = inlined_call_operand.vmem [shape: f32[4,16,3], index: 0, kind: input, shape index: {}]
  %s1 = inlined_call_operand.vmem [shape: f32[3,16], index: 1, kind: input, shape index: {}]
  %s2 = inlined_call_operand.vmem [shape: f32[1,16], index: 2, kind: input, shape index: {}]
  %s3 = inlined_call_operand.vmem [shape: f32[48,32], index: 3, kind: input, shape index: {}]
  %s4 = inlined_call_operand.vmem [shape: f32[1,32], index: 4, kind: input, shape index: {}]
  %s5 = inlined_call_operand.vmem [shape: f32[16,32], index: 5, kind: input, shape index: {}]
  %s6 = inlined_call_operand.<no memory space> [shape: f32[1,1], index: 6, kind: input, shape index: {}]
  %s7 = inlined_call_operand.hbm [shape: f32[4,1,128], index: 7, kind: output, shape index: {}]
  %s8 = sld [smem:[#allocation0]]
  $region61: #{tpu_custom_call.1} parent=0
    _
  %s10 = ssub.s32 1, %s8
  %s11 = scalar_select 0, %s10, %s8
  %12 = sst [smem:[#allocation3]] %s6
  $region1: #{tpu_custom_call.1} parent=0
    #allocation4 [shape = 'u8[2048]{0}', space=vmem, size = 0x800, scoped, tag = 'output window, operand 0']
    #allocation5 [shape = 's32[2]{0}', space=sflag, size = 0x8, scoped, tag = 'scoped memory for tpu_custom_call.1']
    %13 = vsyncpa [#allocation5], 0
    %s14 = scalar_lea.sflag [#allocation5], 1
    %15 = vsyncpa %s14, 0
    loop: start=0, step=1, limit=4
    $region2: #{tpu_custom_call.1} parent=1 // loop_pre_header
      _
    $region3: #{tpu_custom_call.1} parent=1 // loop_header
      %s17 = sphi 0, %s21
      %p18 = scmp.ge.s32.totalorder %s17, 4
      %s27 = sphi 0, %s29
      %s30 = sphi 0, %s27
      %s31 = sphi 0, %s30
      %s47 = sphi 0, %s31
      %s51 = sphi 0, %s51
      %s53 = sphi 0, %s51
      %s54 = sphi 0, %s53
      %s68 = sphi 0, %s54
      %s72 = sphi 0, %s72
      %s74 = sphi 0, %s72
      %s75 = sphi 0, %s74
      %s89 = sphi 0, %s75
      %s93 = sphi 0, %s93
      %s95 = sphi 0, %s93
      %s96 = sphi 0, %s95
      %s110 = sphi 0, %s96
      %s114 = sphi 0, %s114
      %s116 = sphi 0, %s114
      %s117 = sphi 0, %s116
      %s131 = sphi 0, %s117
      %s135 = sphi 0, %s135
      %s137 = sphi 0, %s135
      %s138 = sphi 0, %s137
      %s152 = sphi 0, %s138
      %s156 = sphi 0, %s156
      %s158 = sphi 0, %s156
      %s159 = sphi 0, %s158
      %s173 = sphi 0, %s159
      %s179 = sphi 0, %s181
      %s182 = sphi 0, %s179
      %s183 = sphi 0, %s182
      %s199 = sphi 0, %s183
    $region4: #{tpu_custom_call.1} parent=1 // loop_header_branch
      %20 = sbr.rel (%p18) target = $region8
    $region5: #{tpu_custom_call.1} parent=1 // loop_body
      %s22 = ssub.s32 %s17, 1
      %s23 = ssub.s32 %s17, 2
      %s24 = sadd.s32 %s17, 1
      %s25 = ssub.s32 %s17, %s24
      %p26 = scmp.eq.s32.totalorder %s25, 0
      %s28 = sadd.s32 %s27, 1
      %s29 = scalar_select %p26, %s27, %s28
      %p32 = pneg %p26
      %p33 = scmp.eq.s32.totalorder %s17, 1
      %p34 = por %p32, %p33
      %p35 = scmp.ne.s32.totalorder %s27, %s30
      %p36 = scmp.eq.s32.totalorder %s17, 0
      %p37 = por %p35, %p36
      %p38 = scmp.ne.s32.totalorder %s27, %s30
      %p39 = scmp.eq.s32.totalorder %s22, 1
      %p40 = por %p38, %p39
      %p41 = scmp.ne.s32.totalorder %s30, %s31
      %p42 = scmp.eq.s32.totalorder %s22, 0
      %p43 = por %p41, %p42
      %p44 = scmp.ne.s32.totalorder %s30, %s31
      %p45 = scmp.eq.s32.totalorder %s23, 1
      %p46 = por %p44, %p45
      %p48 = scmp.ne.s32.totalorder %s31, %s47
      %p49 = scmp.eq.s32.totalorder %s23, 0
      %p50 = por %p48, %p49
      %s52 = sadd.s32 %s51, 1
      %p55 = scmp.eq.s32.totalorder %s17, 1
      %p56 = scmp.ne.s32.totalorder %s51, %s53
      %p57 = scmp.eq.s32.totalorder %s17, 0
      %p58 = por %p56, %p57
      %p59 = scmp.ne.s32.totalorder %s51, %s53
      %p60 = scmp.eq.s32.totalorder %s22, 1
      %p61 = por %p59, %p60
      %p62 = scmp.ne.s32.totalorder %s53, %s54
      %p63 = scmp.eq.s32.totalorder %s22, 0
      %p64 = por %p62, %p63
      %p65 = scmp.ne.s32.totalorder %s53, %s54
      %p66 = scmp.eq.s32.totalorder %s23, 1
      %p67 = por %p65, %p66
      %p69 = scmp.ne.s32.totalorder %s54, %s68
      %p70 = scmp.eq.s32.totalorder %s23, 0
      %p71 = por %p69, %p70
      %s73 = sadd.s32 %s72, 1
      %p76 = scmp.eq.s32.totalorder %s17, 1
      %p77 = scmp.ne.s32.totalorder %s72, %s74
      %p78 = scmp.eq.s32.totalorder %s17, 0
      %p79 = por %p77, %p78
      %p80 = scmp.ne.s32.totalorder %s72, %s74
      %p81 = scmp.eq.s32.totalorder %s22, 1
      %p82 = por %p80, %p81
      %p83 = scmp.ne.s32.totalorder %s74, %s75
      %p84 = scmp.eq.s32.totalorder %s22, 0
      %p85 = por %p83, %p84
      %p86 = scmp.ne.s32.totalorder %s74, %s75
      %p87 = scmp.eq.s32.totalorder %s23, 1
      %p88 = por %p86, %p87
      %p90 = scmp.ne.s32.totalorder %s75, %s89
      %p91 = scmp.eq.s32.totalorder %s23, 0
      %p92 = por %p90, %p91
      %s94 = sadd.s32 %s93, 1
      %p97 = scmp.eq.s32.totalorder %s17, 1
      %p98 = scmp.ne.s32.totalorder %s93, %s95
      %p99 = scmp.eq.s32.totalorder %s17, 0
      %p100 = por %p98, %p99
      %p101 = scmp.ne.s32.totalorder %s93, %s95
      %p102 = scmp.eq.s32.totalorder %s22, 1
      %p103 = por %p101, %p102
      %p104 = scmp.ne.s32.totalorder %s95, %s96
      %p105 = scmp.eq.s32.totalorder %s22, 0
      %p106 = por %p104, %p105
      %p107 = scmp.ne.s32.totalorder %s95, %s96
      %p108 = scmp.eq.s32.totalorder %s23, 1
      %p109 = por %p107, %p108
      %p111 = scmp.ne.s32.totalorder %s96, %s110
      %p112 = scmp.eq.s32.totalorder %s23, 0
      %p113 = por %p111, %p112
      %s115 = sadd.s32 %s114, 1
      %p118 = scmp.eq.s32.totalorder %s17, 1
      %p119 = scmp.ne.s32.totalorder %s114, %s116
      %p120 = scmp.eq.s32.totalorder %s17, 0
      %p121 = por %p119, %p120
      %p122 = scmp.ne.s32.totalorder %s114, %s116
      %p123 = scmp.eq.s32.totalorder %s22, 1
      %p124 = por %p122, %p123
      %p125 = scmp.ne.s32.totalorder %s116, %s117
      %p126 = scmp.eq.s32.totalorder %s22, 0
      %p127 = por %p125, %p126
      %p128 = scmp.ne.s32.totalorder %s116, %s117
      %p129 = scmp.eq.s32.totalorder %s23, 1
      %p130 = por %p128, %p129
      %p132 = scmp.ne.s32.totalorder %s117, %s131
      %p133 = scmp.eq.s32.totalorder %s23, 0
      %p134 = por %p132, %p133
      %s136 = sadd.s32 %s135, 1
      %p139 = scmp.eq.s32.totalorder %s17, 1
      %p140 = scmp.ne.s32.totalorder %s135, %s137
      %p141 = scmp.eq.s32.totalorder %s17, 0
      %p142 = por %p140, %p141
      %p143 = scmp.ne.s32.totalorder %s135, %s137
      %p144 = scmp.eq.s32.totalorder %s22, 1
      %p145 = por %p143, %p144
      %p146 = scmp.ne.s32.totalorder %s137, %s138
      %p147 = scmp.eq.s32.totalorder %s22, 0
      %p148 = por %p146, %p147
      %p149 = scmp.ne.s32.totalorder %s137, %s138
      %p150 = scmp.eq.s32.totalorder %s23, 1
      %p151 = por %p149, %p150
      %p153 = scmp.ne.s32.totalorder %s138, %s152
      %p154 = scmp.eq.s32.totalorder %s23, 0
      %p155 = por %p153, %p154
      %s157 = sadd.s32 %s156, 1
      %p160 = scmp.eq.s32.totalorder %s17, 1
      %p161 = scmp.ne.s32.totalorder %s156, %s158
      %p162 = scmp.eq.s32.totalorder %s17, 0
      %p163 = por %p161, %p162
      %p164 = scmp.ne.s32.totalorder %s156, %s158
      %p165 = scmp.eq.s32.totalorder %s22, 1
      %p166 = por %p164, %p165
      %p167 = scmp.ne.s32.totalorder %s158, %s159
      %p168 = scmp.eq.s32.totalorder %s22, 0
      %p169 = por %p167, %p168
      %p170 = scmp.ne.s32.totalorder %s158, %s159
      %p171 = scmp.eq.s32.totalorder %s23, 1
      %p172 = por %p170, %p171
      %p174 = scmp.ne.s32.totalorder %s159, %s173
      %p175 = scmp.eq.s32.totalorder %s23, 0
      %p176 = por %p174, %p175
      %s177 = ssub.s32 %s17, %s24
      %p178 = scmp.eq.s32.totalorder %s177, 0
      %s180 = sadd.s32 %s179, 1
      %s181 = scalar_select %p178, %s179, %s180
      %p184 = pneg %p178
      %p185 = scmp.eq.s32.totalorder %s17, 1
      %p186 = por %p184, %p185
      %p187 = scmp.ne.s32.totalorder %s179, %s182
      %p188 = scmp.eq.s32.totalorder %s17, 0
      %p189 = por %p187, %p188
      %p190 = scmp.ne.s32.totalorder %s179, %s182
      %p191 = scmp.eq.s32.totalorder %s22, 1
      %p192 = por %p190, %p191
      %p193 = scmp.ne.s32.totalorder %s182, %s183
      %p194 = scmp.eq.s32.totalorder %s22, 0
      %p195 = por %p193, %p194
      %p196 = scmp.ne.s32.totalorder %s182, %s183
      %p197 = scmp.eq.s32.totalorder %s23, 1
      %p198 = por %p196, %p197
      %p200 = scmp.ne.s32.totalorder %s183, %s199
      %p201 = scmp.eq.s32.totalorder %s23, 0
      %p202 = por %p200, %p201
      %p203 = scmp.le.s32.totalorder 1, %s17
      %p204 = scmp.lt.s32.totalorder %s17, 3
      %p205 = pnand %p203, %p204
      %p206 = pneg %p205
      // Predicated region
      $region9: #{tpu_custom_call.1} parent=5 // pred_check
        _
      $region10: #{tpu_custom_call.1} parent=5 // pred_check_branch
        %208 = sbr.rel (%p205) target = $region12
      $region11: #{tpu_custom_call.1} parent=5 // pred_region
        %s209 = ssub.s32 %s17, 1
        // Predicated region
        $region13: #{tpu_custom_call.1} parent=11 // pred_check
          %p210 = pneg %p64
        $region14: #{tpu_custom_call.1} parent=11 // pred_check_branch
          %212 = sbr.rel (%p210) target = $region16
        $region15: #{tpu_custom_call.1} parent=11 // pred_region
          _
        $region16: #{tpu_custom_call.1} parent=11 // pred_fallthru
          _
        // Predicated region
        $region17: #{tpu_custom_call.1} parent=11 // pred_check
          %p213 = pneg %p85
        $region18: #{tpu_custom_call.1} parent=11 // pred_check_branch
          %215 = sbr.rel (%p213) target = $region20
        $region19: #{tpu_custom_call.1} parent=11 // pred_region
          _
        $region20: #{tpu_custom_call.1} parent=11 // pred_fallthru
          _
        // Predicated region
        $region21: #{tpu_custom_call.1} parent=11 // pred_check
          %p216 = pneg %p106
        $region22: #{tpu_custom_call.1} parent=11 // pred_check_branch
          %218 = sbr.rel (%p216) target = $region24
        $region23: #{tpu_custom_call.1} parent=11 // pred_region
          _
        $region24: #{tpu_custom_call.1} parent=11 // pred_fallthru
          _
        // Predicated region
        $region25: #{tpu_custom_call.1} parent=11 // pred_check
          %p219 = pneg %p127
        $region26: #{tpu_custom_call.1} parent=11 // pred_check_branch
          %221 = sbr.rel (%p219) target = $region28
        $region27: #{tpu_custom_call.1} parent=11 // pred_region
          _
        $region28: #{tpu_custom_call.1} parent=11 // pred_fallthru
          _
        // Predicated region
        $region29: #{tpu_custom_call.1} parent=11 // pred_check
          %p222 = pneg %p148
        $region30: #{tpu_custom_call.1} parent=11 // pred_check_branch
          %224 = sbr.rel (%p222) target = $region32
        $region31: #{tpu_custom_call.1} parent=11 // pred_region
          _
        $region32: #{tpu_custom_call.1} parent=11 // pred_fallthru
          _
        // Predicated region
        $region33: #{tpu_custom_call.1} parent=11 // pred_check
          %p225 = pneg %p169
        $region34: #{tpu_custom_call.1} parent=11 // pred_check_branch
          %227 = sbr.rel (%p225) target = $region36
        $region35: #{tpu_custom_call.1} parent=11 // pred_region
          _
        $region36: #{tpu_custom_call.1} parent=11 // pred_fallthru
          _
      $region12: #{tpu_custom_call.1} parent=5 // pred_fallthru
        _
      %p228 = scmp.lt.s32.totalorder %s17, 2
      // Predicated region
      $region37: #{tpu_custom_call.1} parent=5 // pred_check
        %p229 = pneg %p228
      $region38: #{tpu_custom_call.1} parent=5 // pred_check_branch
        %231 = sbr.rel (%p229) target = $region40
      $region39: #{tpu_custom_call.1} parent=5 // pred_region
        // Predicated region
        $region41: #{tpu_custom_call.1} parent=39 // pred_check
          %p232 = pneg %p37
        $region42: #{tpu_custom_call.1} parent=39 // pred_check_branch
          %234 = sbr.rel (%p232) target = $region44
        $region43: #{tpu_custom_call.1} parent=39 // pred_region
          %s235 = smul.u32 2, %s17
          %p236 = scmp.lt.s32.totalorder %s235, 3
          %s237 = scalar_select %p236, %s235, 3
          %s238 = smul.addr %s237, 2
          %s239 = smul.addr %s238, 8
          %s240 = scalar_lea.vmem %s0, %s239
          %s241 = smul.u32 2, %s17
        $region44: #{tpu_custom_call.1} parent=39 // pred_fallthru
          _
      $region40: #{tpu_custom_call.1} parent=5 // pred_fallthru
        _
      %p242 = scmp.le.s32.totalorder 1, %s17
      %p243 = scmp.lt.s32.totalorder %s17, 3
      %p244 = pnand %p242, %p243
      %p245 = pneg %p244
      // Predicated region
      $region45: #{tpu_custom_call.1} parent=5 // pred_check
        _
      $region46: #{tpu_custom_call.1} parent=5 // pred_check_branch
        %247 = sbr.rel (%p244) target = $region48
      $region47: #{tpu_custom_call.1} parent=5 // pred_region
        %s248 = ssub.s32 %s17, 1
        %s249 = smul.u32 2, %s22
        %p250 = scmp.lt.s32.totalorder %s249, 3
        %s251 = scalar_select %p250, %s249, 3
        %s252 = smul.addr %s251, 2
        %s253 = smul.addr %s252, 8
        %s254 = scalar_lea.vmem %s0, %s253
        %p255 = pneg %p43
        %p256 = pneg %p40
        %p257 = pneg %p64
        %p258 = pneg %p61
        %p259 = pneg %p85
        %p260 = pneg %p82
        %p261 = pneg %p106
        %p262 = pneg %p103
        %p263 = pneg %p127
        %p264 = pneg %p124
        %p265 = pneg %p148
        %p266 = pneg %p145
        %p267 = pneg %p169
        %p268 = pneg %p166
        %p269 = pneg %p195
        %p270 = pneg %p192
        %s271 = sand.u32 %s182, 1
        %s272 = scalar_lea.sflag [#allocation5], %s271
        %s273 = sand.u32 %s182, 1
        %s274 = smul.addr %s273, 2
        %s275 = scalar_lea.vmem [#allocation4], %s274
        %s276 = smul.u32 2, %s22
        %p277 = scmp.lt.s32.totalorder %s276, 3
        %s278 = scalar_select %p277, %s276, 3
        %s279 = smul.addr %s278, 2
        %s280 = smul.addr %s279, 8
        %s281 = scalar_lea.vmem %s0, %s280
        %s282 = smul.u32 2, %s22
        %s283 = smul.u32 2, %s22
        %v284 = vld [vmem:[%s281] sm:$0xff]
        %v285 = vld [vmem:[%s281 + $0x8] sm:$0xff]
        %v286 = vld [vmem:[%s281 + $0x10] sm:$0xff]
        %v287 = vld [vmem:[%s281 + $0x18] sm:$0xff]
        %v288 = vld [vmem:[%s1] sm:$0x7]
        %v289 = vld [vmem:[%s2] sm:$0x1]
        %v291 = vlaneseq
        %v292 = vshrl.u32 %v291, 7
        %v293 = vsub.s32 0, %v292
        %v294 = vrot.slane %v289, %v293
        %vm296 = vcmask 23552
        %v298 = vsel %vm296, %v284, 0
        %v301 = vsel %vm296, %v285, 0
        %v304 = vsel %vm296, %v286, 0
        %v307 = vsel %vm296, %v287, 0
        %vm309 = vcmask 1042432
        %v311 = vsel %vm309, %v288, 0
        %313 = vmatprep.subr.mxu0 0.0
        %314 = vmatpush1.msra.mxu0 %v311
        %315 = vmatprep.subr.mxu0 0.0
        %316 = vmatpush1.msra.mxu0 0.0
        %317 = vmatprep.subr.mxu0 0.0
        %318 = vmatpush1.msra.mxu0 0.0
        %319 = vmatprep.subr.mxu0 0.0
        %320 = vmatpush1.msra.mxu0 0.0
        %321 = vmatprep.subr.mxu0 0.0
        %322 = vmatpush1.msra.mxu0 0.0
        %323 = vmatprep.subr.mxu0 0.0
        %324 = vmatpush1.msra.mxu0 0.0
        %325 = vmatprep.subr.mxu0 0.0
        %326 = vmatpush1.msra.mxu0 0.0
        %327 = vmatprep.subr.mxu0 0.0
        %328 = vmatpush1.msra.mxu0 0.0
        %329 = vmatprep.subr.mxu0 0.0
        %330 = vmatpush1.msra.mxu0 0.0
        %331 = vmatprep.subr.mxu0 0.0
        %332 = vmatpush1.msra.mxu0 0.0
        %333 = vmatprep.subr.mxu0 0.0
        %334 = vmatpush1.msra.mxu0 0.0
        %335 = vmatprep.subr.mxu0 0.0
        %336 = vmatpush1.msra.mxu0 0.0
        %337 = vmatprep.subr.mxu0 0.0
        %338 = vmatpush1.msra.mxu0 0.0
        %339 = vmatprep.subr.mxu0 0.0
        %340 = vmatpush1.msra.mxu0 0.0
        %341 = vmatprep.subr.mxu0 0.0
        %342 = vmatpush1.msra.mxu0 0.0
        %343 = vmatprep.subr.mxu0 0.0
        %344 = vmatpush1.msra.mxu0 0.0
        %345 = vmatprep.subr.mxu0 0.0
        %346 = vmatpush1.msra.mxu0 0.0
        %347 = vmatprep.subr.mxu0 0.0
        %348 = vmatpush1.msra.mxu0 0.0
        %349 = vmatprep.subr.mxu0 0.0
        %350 = vmatpush1.msra.mxu0 0.0
        %351 = vmatprep.subr.mxu0 0.0
        %352 = vmatpush1.msra.mxu0 0.0
        %353 = vmatprep.subr.mxu0 0.0
        %354 = vmatpush1.msra.mxu0 0.0
        %355 = vmatprep.subr.mxu0 0.0
        %356 = vmatpush1.msra.mxu0 0.0
        %357 = vmatprep.subr.mxu0 0.0
        %358 = vmatpush1.msra.mxu0 0.0
        %359 = vmatprep.subr.mxu0 0.0
        %360 = vmatpush1.msra.mxu0 0.0
        %361 = vmatprep.subr.mxu0 0.0
        %362 = vmatpush1.msra.mxu0 0.0
        %363 = vmatprep.subr.mxu0 0.0
        %364 = vmatpush1.msra.mxu0 0.0
        %365 = vmatprep.subr.mxu0 0.0
        %366 = vmatpush1.msra.mxu0 0.0
        %367 = vmatprep.subr.mxu0 0.0
        %368 = vmatpush1.msra.mxu0 0.0
        %369 = vmatprep.subr.mxu0 0.0
        %370 = vmatpush1.msra.mxu0 0.0
        %371 = vmatprep.subr.mxu0 0.0
        %372 = vmatpush1.msra.mxu0 0.0
        %373 = vmatprep.subr.mxu0 0.0
        %374 = vmatpush1.msra.mxu0 0.0
        %375 = vmatprep.subr.mxu0 0.0
        %376 = vmatpush1.msra.mxu0 0.0
        %377 = vmatprep.mubr.f32.mxu0 0.0
        %378 = vmatmul.mubr.f32.gmra.mrb[0].mxu0 %v298
        %v379 = vpop.f32.mrb[0].mxu0
        %v380 = vadd.f32 %v294, %v379
        %v381 = vpop.f32.mrb[0].mxu0
        %382 = vmatprep.mubr.f32.mxu0 0.0
        %383 = vmatmul.mubr.f32.gmra.mrb[0].mxu0 %v301
        %v384 = vpop.f32.mrb[0].mxu0
        %v385 = vadd.f32 %v294, %v384
        %v386 = vpop.f32.mrb[0].mxu0
        %387 = vmatprep.mubr.f32.mxu0 0.0
        %388 = vmatmul.mubr.f32.gmra.mrb[0].mxu0 %v304
        %v389 = vpop.f32.mrb[0].mxu0
        %v390 = vadd.f32 %v294, %v389
        %v391 = vpop.f32.mrb[0].mxu0
        %392 = vmatprep.mubr.f32.mxu0 0.0
        %393 = vmatmul.mubr.f32.gmra.mrb[0].mxu0 %v307
        %v394 = vpop.f32.mrb[0].mxu0
        %v395 = vadd.f32 %v294, %v394
        %v396 = vpop.f32.mrb[0].mxu0
        %397 = vdwg.mxu0
        %v398 = vmax.f32 %v380, 0.0
        %v399 = vmax.f32 %v385, 0.0
        %v400 = vmax.f32 %v390, 0.0
        %v401 = vmax.f32 %v395, 0.0
        %vm402 = vcmask 122880
        %403 = vst.msk [vmem:[#allocation2] sm:$0x1] %vm402, 0.0
        %404 = vst.msk [vmem:[#allocation2 + $0x18] sm:$0x1] %vm402, 0.0
        %405 = vst.msk [vmem:[#allocation2 + $0x11] sm:$0x1] %vm402, 0.0
        %406 = vst.msk [vmem:[#allocation2 + $0x29] sm:$0x1] %vm402, 0.0
        %vm407 = vcmask 130048
        %408 = vst.msk [vmem:[#allocation2 + $0x1] sm:$0xff] %vm407, %v398
        %409 = vst.msk [vmem:[#allocation2 + $0x9] sm:$0xff] %vm407, %v399
        %410 = vst.msk [vmem:[#allocation2 + $0x19] sm:$0xff] %vm407, %v400
        %411 = vst.msk [vmem:[#allocation2 + $0x21] sm:$0xff] %vm407, %v401
        %v412 = vld [vmem:[#allocation2] sm:$0xff]
        %v413 = vld [vmem:[#allocation2 + $0x8] sm:$0xff]
        %v414 = vld [vmem:[#allocation2 + $0x10] sm:$0x3]
        %v415 = vld [vmem:[#allocation2 + $0x18] sm:$0xff]
        %v416 = vld [vmem:[#allocation2 + $0x20] sm:$0xff]
        %v417 = vld [vmem:[#allocation2 + $0x28] sm:$0x3]
        %vm424 = vcmask 1046528
        %v425 = vrot.slane %v412, 1
        %v426 = vrot.slane %v413, 1
        %v427 = vsel %vm424, %v425, %v426
        %v428 = vrot.slane %v414, 1
        %v429 = vsel %vm424, %v426, %v428
        %v430 = vrot.slane %v415, 1
        %v431 = vrot.slane %v416, 1
        %v432 = vsel %vm424, %v430, %v431
        %v433 = vrot.slane %v417, 1
        %v434 = vsel %vm424, %v431, %v433
        %435 = vrot.lane.b32.xlu0 %v427, 16
        %v436 = vpop.permute.xlu0 %435
        %437 = vrot.lane.b32.xlu0 %v429, 16
        %v438 = vpop.permute.xlu0 %437
        %439 = vrot.lane.b32.xlu0 %v432, 16
        %v440 = vpop.permute.xlu0 %439
        %441 = vrot.lane.b32.xlu0 %v434, 16
        %v442 = vpop.permute.xlu0 %441
        %vm447 = vcmask 1045504
        %v448 = vrot.slane %v412, 2
        %v449 = vrot.slane %v413, 2
        %v450 = vsel %vm447, %v448, %v449
        %v451 = vrot.slane %v414, 2
        %v452 = vsel %vm447, %v449, %v451
        %v453 = vrot.slane %v415, 2
        %v454 = vrot.slane %v416, 2
        %v455 = vsel %vm447, %v453, %v454
        %v456 = vrot.slane %v417, 2
        %v457 = vsel %vm447, %v454, %v456
        %458 = vrot.lane.b32.xlu0 %v450, 32
        %v459 = vpop.permute.xlu0 %458
        %460 = vrot.lane.b32.xlu0 %v452, 32
        %v461 = vpop.permute.xlu0 %460
        %462 = vrot.lane.b32.xlu0 %v455, 32
        %v463 = vpop.permute.xlu0 %462
        %464 = vrot.lane.b32.xlu0 %v457, 32
        %v465 = vpop.permute.xlu0 %464
        %v470 = vsel %vm407, %v412, %v436
        %v471 = vsel %vm407, %v413, %v438
        %v472 = vsel %vm407, %v415, %v440
        %v473 = vsel %vm407, %v416, %v442
        %vm474 = vcmask 261120
        %v475 = vsel %vm474, %v470, %v459
        %v476 = vsel %vm474, %v471, %v461
        %v477 = vsel %vm474, %v472, %v463
        %v478 = vsel %vm474, %v473, %v465
        %v479 = vld [vmem:[%s3] sm:$0xff]
        %v480 = vld [vmem:[%s3 + $0x8] sm:$0xff]
        %v481 = vld [vmem:[%s3 + $0x10] sm:$0xff]
        %v482 = vld [vmem:[%s3 + $0x18] sm:$0xff]
        %v483 = vld [vmem:[%s3 + $0x20] sm:$0xff]
        %v484 = vld [vmem:[%s3 + $0x28] sm:$0xff]
        %v485 = vld [vmem:[%s4] sm:$0x1]
        %v487 = vlaneseq
        %v488 = vshrl.u32 %v487, 7
        %v489 = vsub.s32 0, %v488
        %v490 = vrot.slane %v485, %v489
        %vm492 = vcmask 392192
        %v494 = vsel %vm492, %v475, 0
        %v497 = vsel %vm492, %v476, 0
        %v500 = vsel %vm492, %v477, 0
        %v503 = vsel %vm492, %v478, 0
        %505 = vmatprep.subr.mxu0 0.0
        %506 = vmatpush1.msra.mxu0 %v479
        %507 = vmatprep.subr.mxu0 0.0
        %508 = vmatpush1.msra.mxu0 %v480
        %509 = vmatprep.subr.mxu0 0.0
        %510 = vmatpush1.msra.mxu0 %v481
        %511 = vmatprep.subr.mxu0 0.0
        %512 = vmatpush1.msra.mxu0 %v482
        %513 = vmatprep.subr.mxu0 0.0
        %514 = vmatpush1.msra.mxu0 %v483
        %515 = vmatprep.subr.mxu0 0.0
        %516 = vmatpush1.msra.mxu0 %v484
        %517 = vmatprep.subr.mxu0 0.0
        %518 = vmatpush1.msra.mxu0 0.0
        %519 = vmatprep.subr.mxu0 0.0
        %520 = vmatpush1.msra.mxu0 0.0
        %521 = vmatprep.subr.mxu0 0.0
        %522 = vmatpush1.msra.mxu0 0.0
        %523 = vmatprep.subr.mxu0 0.0
        %524 = vmatpush1.msra.mxu0 0.0
        %525 = vmatprep.subr.mxu0 0.0
        %526 = vmatpush1.msra.mxu0 0.0
        %527 = vmatprep.subr.mxu0 0.0
        %528 = vmatpush1.msra.mxu0 0.0
        %529 = vmatprep.subr.mxu0 0.0
        %530 = vmatpush1.msra.mxu0 0.0
        %531 = vmatprep.subr.mxu0 0.0
        %532 = vmatpush1.msra.mxu0 0.0
        %533 = vmatprep.subr.mxu0 0.0
        %534 = vmatpush1.msra.mxu0 0.0
        %535 = vmatprep.subr.mxu0 0.0
        %536 = vmatpush1.msra.mxu0 0.0
        %537 = vmatprep.subr.mxu0 0.0
        %538 = vmatpush1.msra.mxu0 0.0
        %539 = vmatprep.subr.mxu0 0.0
        %540 = vmatpush1.msra.mxu0 0.0
        %541 = vmatprep.subr.mxu0 0.0
        %542 = vmatpush1.msra.mxu0 0.0
        %543 = vmatprep.subr.mxu0 0.0
        %544 = vmatpush1.msra.mxu0 0.0
        %545 = vmatprep.subr.mxu0 0.0
        %546 = vmatpush1.msra.mxu0 0.0
        %547 = vmatprep.subr.mxu0 0.0
        %548 = vmatpush1.msra.mxu0 0.0
        %549 = vmatprep.subr.mxu0 0.0
        %550 = vmatpush1.msra.mxu0 0.0
        %551 = vmatprep.subr.mxu0 0.0
        %552 = vmatpush1.msra.mxu0 0.0
        %553 = vmatprep.subr.mxu0 0.0
        %554 = vmatpush1.msra.mxu0 0.0
        %555 = vmatprep.subr.mxu0 0.0
        %556 = vmatpush1.msra.mxu0 0.0
        %557 = vmatprep.subr.mxu0 0.0
        %558 = vmatpush1.msra.mxu0 0.0
        %559 = vmatprep.subr.mxu0 0.0
        %560 = vmatpush1.msra.mxu0 0.0
        %561 = vmatprep.subr.mxu0 0.0
        %562 = vmatpush1.msra.mxu0 0.0
        %563 = vmatprep.subr.mxu0 0.0
        %564 = vmatpush1.msra.mxu0 0.0
        %565 = vmatprep.subr.mxu0 0.0
        %566 = vmatpush1.msra.mxu0 0.0
        %567 = vmatprep.subr.mxu0 0.0
        %568 = vmatpush1.msra.mxu0 0.0
        %569 = vmatprep.mubr.f32.mxu0 0.0
        %570 = vmatmul.mubr.f32.gmra.mrb[0].mxu0 %v494
        %v571 = vpop.f32.mrb[0].mxu0
        %v572 = vadd.f32 %v490, %v571
        %v573 = vpop.f32.mrb[0].mxu0
        %574 = vmatprep.mubr.f32.mxu0 0.0
        %575 = vmatmul.mubr.f32.gmra.mrb[0].mxu0 %v497
        %v576 = vpop.f32.mrb[0].mxu0
        %v577 = vadd.f32 %v490, %v576
        %v578 = vpop.f32.mrb[0].mxu0
        %579 = vmatprep.mubr.f32.mxu0 0.0
        %580 = vmatmul.mubr.f32.gmra.mrb[0].mxu0 %v500
        %v581 = vpop.f32.mrb[0].mxu0
        %v582 = vadd.f32 %v490, %v581
        %v583 = vpop.f32.mrb[0].mxu0
        %584 = vmatprep.mubr.f32.mxu0 0.0
        %585 = vmatmul.mubr.f32.gmra.mrb[0].mxu0 %v503
        %v586 = vpop.f32.mrb[0].mxu0
        %v587 = vadd.f32 %v490, %v586
        %v588 = vpop.f32.mrb[0].mxu0
        %589 = vdwg.mxu0
        %v590 = vmax.f32 %v572, 0.0
        %v591 = vmax.f32 %v577, 0.0
        %v592 = vmax.f32 %v582, 0.0
        %v593 = vmax.f32 %v587, 0.0
        %v594 = vld [vmem:[%s5] sm:$0xff]
        %v595 = vld [vmem:[%s5 + $0x8] sm:$0xff]
        %v596 = vmul.f32 %v590, %v594
        %v597 = vmul.f32 %v591, %v595
        %v598 = vmul.f32 %v592, %v594
        %v599 = vmul.f32 %v593, %v595
        %v600 = vsel %vm474, %v596, 0.0
        %601 = vadd.xlane.f32.xlu0 %v600
        %v602 = vpop.xlane.xlu0 %601
        %v603 = vsel %vm474, %v597, 0.0
        %604 = vadd.xlane.f32.xlu0 %v603
        %v605 = vpop.xlane.xlu0 %604
        %v606 = vsel %vm474, %v598, 0.0
        %607 = vadd.xlane.f32.xlu0 %v606
        %v608 = vpop.xlane.xlu0 %607
        %v609 = vsel %vm474, %v599, 0.0
        %610 = vadd.xlane.f32.xlu0 %v609
        %v611 = vpop.xlane.xlu0 %610
        %v616 = vlaneseq
        %v617 = vand.u32 %v616, 127
        %v618 = vlaneseq
        %v619 = vshrl.u32 %v618, 7
        %v620 = vsub.s32 %v617, %v619
        %v621 = vrot.slane %v602, %v620
        %v622 = vadd.s32 %v617, 4294967288
        %v623 = vlaneseq
        %v624 = vshrl.u32 %v623, 7
        %v625 = vsub.s32 %v622, %v624
        %v626 = vrot.slane %v605, %v625
        %vm627 = vcmask 130112
        %v628 = vsel %vm627, %v626, %v621
        %v629 = vlaneseq
        %v630 = vshrl.u32 %v629, 7
        %v631 = vsub.s32 %v617, %v630
        %v632 = vrot.slane %v608, %v631
        %v633 = vlaneseq
        %v634 = vshrl.u32 %v633, 7
        %v635 = vsub.s32 %v622, %v634
        %v636 = vrot.slane %v611, %v635
        %v637 = vsel %vm627, %v636, %v632
        %vm638 = vcmask 1041409
        %v639 = vsel %vm638, %v637, %v628
        %vm641 = vcmask 123904
        %v642 = vsel %vm641, %v639, 0.0
        %643 = vadd.xlane.f32.xlu0 %v642
        %v644 = vpop.xlane.xlu0 %643
        %s645 = sld [smem:[#allocation3]]
        %v646 = vstv %s645
        %v647 = vadd.f32 %v644, %v646
        %v649 = vlaneseq
        %v650 = vshrl.u32 %v649, 7
        %v651 = vsub.s32 0, %v650
        %v652 = vrot.slane %v647, %v651
        %v653 = vlaneseq
        %v654 = vshrl.u32 %v653, 7
        %v655 = vsub.s32 1, %v654
        %v656 = vrot.slane %v647, %v655
        %659 = vst [vmem:[%s275] sm:$0x1] %v652
        %660 = vst [vmem:[%s275 + $0x1] sm:$0x1] %v656
        %s661 = sand.u32 %s182, 1
        %s662 = scalar_lea.sflag [#allocation5], %s661
        %s663 = sand.u32 %s182, 1
        %s664 = smul.addr %s663, 2
        %s665 = scalar_lea.vmem [#allocation4], %s664
        // Predicated region
        $region49: #{tpu_custom_call.1} parent=47 // pred_check
          %p666 = pneg %p192
        $region50: #{tpu_custom_call.1} parent=47 // pred_check_branch
          %668 = sbr.rel (%p666) target = $region52
        $region51: #{tpu_custom_call.1} parent=47 // pred_region
          %s669 = smul.u32 2, %s22
          %s671 = ssub.s32 32, 32
          %672 = vsyncadd %s662, %s671
          %s673 = smul.addr %s669, 16
          %s674 = scalar_lea.hbm %s7, %s673
          %s675 = sshll.u32 %s665, 4
          %s676 = int_to_ptr.vmem [resolvable:$true] %s675
          %681 = dma.vmem_to_hbm [thread:$0]  %s676, 32, %s674, %s662, 16, 16, 1
        $region52: #{tpu_custom_call.1} parent=47 // pred_fallthru
          _
      $region48: #{tpu_custom_call.1} parent=5 // pred_fallthru
        _
      %p682 = scmp.le.s32.totalorder 2, %s17
      // Predicated region
      $region53: #{tpu_custom_call.1} parent=5 // pred_check
        %p683 = pneg %p682
      $region54: #{tpu_custom_call.1} parent=5 // pred_check_branch
        %685 = sbr.rel (%p683) target = $region56
      $region55: #{tpu_custom_call.1} parent=5 // pred_region
        %s686 = ssub.s32 %s17, 2
        // Predicated region
        $region57: #{tpu_custom_call.1} parent=55 // pred_check
          %p687 = pneg %p198
        $region58: #{tpu_custom_call.1} parent=55 // pred_check_branch
          %689 = sbr.rel (%p687) target = $region60
        $region59: #{tpu_custom_call.1} parent=55 // pred_region
          %s690 = sand.u32 %s183, 1
          %s691 = scalar_lea.sflag [#allocation5], %s690
          %s692 = sand.u32 %s183, 1
          %s693 = smul.addr %s692, 2
          %s694 = scalar_lea.vmem [#allocation4], %s693
          %695 = dma.done %s691, 32
        $region60: #{tpu_custom_call.1} parent=55 // pred_fallthru
          _
      $region56: #{tpu_custom_call.1} parent=5 // pred_fallthru
        _
    $region6: #{tpu_custom_call.1} parent=1 // loop_footer
      %s21 = sadd.s32 1, %s17
    $region7: #{tpu_custom_call.1} parent=1 // loop_footer_branch
      %16 = sbr.rel target = $region3
    $region8: #{tpu_custom_call.1} parent=1 // loop_exit
      _
    %696 = vsyncpa [#allocation5], 1
    %s697 = scalar_lea.sflag [#allocation5], 1
    %698 = vsyncpa %s697, 1

</llo_original>
